<compile_context>
chip_gen: v7x
topology: tpu7x:2x2x1
jax: 0.10.0
libtpu: 0.0.40
codegen_flags: <defaults>
</compile_context>

<pallas_src>
import functools
import math

import jax
import jax.numpy as jnp
from jax import lax
from jax.experimental import pallas as pl
from jax.experimental.pallas import tpu as pltpu

LANE = 128  # TPU lane width


def _round_up(x, m):
    return (x + m - 1) // m * m


# ---------------------------------------------------------------------------
# Fused Pallas kernel: whole MLP trunk + Gaussian head
# ---------------------------------------------------------------------------
def _actor_kernel(*refs, n_layers, deterministic, action_lim,
                  log_std_min, log_std_max):
    # refs = [phi, (eps,) w1, b1, ..., wN, bN, action_out]
    phi_ref = refs[0]
    base = 1
    eps_ref = None
    if not deterministic:
        eps_ref = refs[1]
        base = 2
    wb_refs = refs[base:base + 2 * n_layers]
    act_ref = refs[base + 2 * n_layers]

    # --- MLP trunk: hidden Linear+ReLU layers (bf16 MXU matmul, f32 accum) ---
    x = phi_ref[...]                               # bf16 (tb, obs_dim)
    for li in range(n_layers - 1):
        w = wb_refs[2 * li][...]                   # bf16 (din, dout_pad)
        b = wb_refs[2 * li + 1][...]               # f32  (1, dout_pad)
        y = jnp.dot(x, w, preferred_element_type=jnp.float32) + b
        x = jnp.maximum(y, 0.0)                    # ReLU, f32
        if li < n_layers - 2:                      # next layer is bf16 again
            x = x.astype(jnp.bfloat16)

    # --- head layer (Linear) in f32: emits [mean_pad | log_std_pad] ---------
    w = wb_refs[2 * (n_layers - 1)][...]           # f32 (hid_pad, 2*a_pad)
    b = wb_refs[2 * (n_layers - 1) + 1][...]       # f32 (1, 2*a_pad)
    y = jnp.dot(x.astype(jnp.float32), w, preferred_element_type=jnp.float32) + b

    a_pad = y.shape[-1] // 2
    mean = action_lim * jnp.tanh(y[:, :a_pad])     # padded lanes stay exactly 0

    if deterministic:
        act_ref[...] = mean.astype(act_ref.dtype)
    else:
        log_std = jnp.clip(y[:, a_pad:], log_std_min, log_std_max)  # hard clamp
        std = jnp.exp(log_std)
        # Widen eps (tb, action_dim) -> (tb, a_pad) with a tiny MXU selector
        # matmul: keeps everything 128-lane dense, the padded lanes of eps_full
        # are exactly 0, so padded output lanes stay exactly 0 as well.
        ad = eps_ref.shape[-1]
        row = lax.broadcasted_iota(jnp.int32, (ad, a_pad), 0)
        col = lax.broadcasted_iota(jnp.int32, (ad, a_pad), 1)
        sel = (row == col).astype(jnp.float32)
        eps_full = jnp.dot(eps_ref[...], sel, preferred_element_type=jnp.float32)
        act_ref[...] = (mean + std * eps_full).astype(act_ref.dtype)


# ---------------------------------------------------------------------------
# Wrapper: single pallas_call, batch-only grid, no host-side padding passes
# ---------------------------------------------------------------------------
def actor_forward(padded_params, phi, eps=None, *, action_dim, action_lim,
                  log_std_bounds, deterministic=False, batch_tile=512,
                  out_dtype=jnp.float32):
    B, obs_dim = phi.shape
    n_layers = len(padded_params)
    a_pad = padded_params[-1][0].shape[1] // 2     # padded action width (128-mult)

    # Batch tile: multiple of 16 (bf16 sublane packing); aim for >=2 grid steps
    # so the "parallel" batch axis shards across both v7x TensorCores; never
    # larger than the (sublane-rounded) batch so at most the last block is
    # ragged (its OOB rows are discarded below).
    batch_tile = max(16, _round_up(batch_tile, 16))
    tb = min(batch_tile, _round_up(-(-B // 2), 16))
    tb = min(tb, _round_up(B, 8))
    grid = (pl.cdiv(B, tb),)

    inputs = [phi.astype(jnp.bfloat16)]            # halves the phi HBM stream
    in_specs = [pl.BlockSpec((tb, obs_dim), lambda i: (i, 0))]
    if not deterministic:
        assert eps is not None and eps.shape == (B, action_dim)
        inputs.append(eps.astype(jnp.float32))     # streamed at true width
        in_specs.append(pl.BlockSpec((tb, action_dim), lambda i: (i, 0)))
    for w_p, b_p in padded_params:
        # Constant block index (0, 0): Pallas keeps weights/biases resident in
        # VMEM across the whole batch grid without re-issuing their DMA.
        in_specs.append(pl.BlockSpec(w_p.shape, lambda i: (0, 0)))
        in_specs.append(pl.BlockSpec(b_p.shape, lambda i: (0, 0)))
        inputs += [w_p, b_p]

    kernel = functools.partial(
        _actor_kernel, n_layers=n_layers, deterministic=bool(deterministic),
        action_lim=float(action_lim),
        log_std_min=float(log_std_bounds[0]),
        log_std_max=float(log_std_bounds[1]))

    out = pl.pallas_call(
        kernel,
        out_shape=jax.ShapeDtypeStruct((B, a_pad), out_dtype),
        grid=grid,
        in_specs=in_specs,
        out_specs=pl.BlockSpec((tb, a_pad), lambda i: (i, 0)),
        compiler_params=pltpu.CompilerParams(
            dimension_semantics=("parallel",),
            vmem_limit_bytes=32 * 1024 * 1024),
    )(*inputs)
    # Tiny trailing slice to the true action width (out_dtype could be bf16 and
    # the padded slab returned directly if the consumer tolerates it).
    return out[:, :action_dim]


# ---------------------------------------------------------------------------
# Parameter init (mirrors layer_init with init_type='orthogonal_') + packing
# ---------------------------------------------------------------------------
def _calculate_gain(nonlinearity):
    nl = nonlinearity.lower()
    if nl == "relu":
        return math.sqrt(2.0)
    if nl == "tanh":
        return 5.0 / 3.0
    return 1.0


def _orthogonal(key, out_dim, in_dim, gain):
    rows, cols = out_dim, in_dim
    flat = jax.random.normal(key, (max(rows, cols), min(rows, cols)), jnp.float32)
    q, r = jnp.linalg.qr(flat)
    q = q * jnp.sign(jnp.diagonal(r))
    if rows < cols:
        q = q.T
    return gain * q[:rows, :cols]


def init_actor_raw_params(key, layer_dims, hidden_act="ReLU",
                          output_act="Linear", w_scale=1.0, last_w_scale=1e-3):
    """Returns [(W(in,out) f32, b(out,) f32, act_name), ...] (unpadded)."""
    params = []
    n_layers = len(layer_dims) - 1
    for i in range(n_layers):
        is_last = (i + 1 == n_layers)
        act = output_act if is_last else hidden_act
        w_s = last_w_scale if is_last else w_scale
        key, sub = jax.random.split(key)
        w_pt = _orthogonal(sub, layer_dims[i + 1], layer_dims[i],
                           _calculate_gain(act)) * w_s      # (out, in), torch layout
        params.append((w_pt.T, jnp.zeros((layer_dims[i + 1],), jnp.float32), act))
    return params


def pad_actor_params(raw_params, action_dim):
    """Pack weights for the kernel.

    * First layer keeps its true input dim (phi is streamed unpadded).
    * Hidden output dims are zero-padded to 128 lanes; hidden weights are bf16
      (MXU native, half the resident bytes), biases f32.
    * The head layer is packed as [mean | log_std] with each half in its own
      128-lane-aligned slab and is kept in f32 for parity with torch.
    """
    padded = []
    n = len(raw_params)
    for idx, (w, b, _act) in enumerate(raw_params):
        din, dout = w.shape
        din_p = din if idx == 0 else _round_up(din, LANE)
        if idx == n - 1:
            a = action_dim
            assert dout == 2 * a, "last layer must emit [mean, log_std]"
            a_p = _round_up(a, LANE)
            w_p = jnp.zeros((din_p, 2 * a_p), jnp.float32)
            w_p = w_p.at[:din, :a].set(w[:, :a])
            w_p = w_p.at[:din, a_p:a_p + a].set(w[:, a:])
            b_p = jnp.zeros((1, 2 * a_p), jnp.float32)
            b_p = b_p.at[0, :a].set(b[:a]).at[0, a_p:a_p + a].set(b[a:])
            padded.append((w_p, b_p))                        # head stays f32
        else:
            dout_p = _round_up(dout, LANE)
            w_p = jnp.zeros((din_p, dout_p), jnp.float32).at[:din, :dout].set(w)
            b_p = jnp.zeros((1, dout_p), jnp.float32).at[0, :dout].set(b)
            padded.append((w_p.astype(jnp.bfloat16), b_p))
    return padded


# ---------------------------------------------------------------------------
# Pure-JAX references
# ---------------------------------------------------------------------------
def ref_actor_forward(raw_params, phi, eps, *, action_dim, action_lim,
                      log_std_bounds, deterministic=False,
                      match_kernel_dtypes=True):
    """match_kernel_dtypes=True mirrors the kernel's mixed precision
    (bf16 hidden matmuls w/ f32 accumulation, f32 head); False is the
    full-f32 torch-parity reference."""
    x = phi.astype(jnp.float32)
    n = len(raw_params)
    for i, (w, b, act) in enumerate(raw_params):
        if match_kernel_dtypes and i < n - 1:
            y = jnp.dot(x.astype(jnp.bfloat16), w.astype(jnp.bfloat16),
                        preferred_element_type=jnp.float32) + b
        else:
            y = jnp.dot(x, w, preferred_element_type=jnp.float32) + b
        x = jnp.maximum(y, 0.0) if act == "ReLU" else y
    mean = action_lim * jnp.tanh(x[:, :action_dim])
    if deterministic:
        return mean
    log_std = jnp.clip(x[:, action_dim:], log_std_bounds[0], log_std_bounds[1])
    return mean + jnp.exp(log_std) * eps


if __name__ == "__main__":
    key = jax.random.PRNGKey(0)

    # Small shapes consistent with MLPRepGaussianActor:
    # layer_dims = [obs_dim, hidden, hidden, 2 * action_dim]
    obs_dim, hidden, action_dim = 16, 32, 4
    layer_dims = [obs_dim, hidden, hidden, 2 * action_dim]
    action_lim = 1.0
    log_std_bounds = (-20.0, 2.0)

    k_params, k_data = jax.random.split(key)
    raw_params = init_actor_raw_params(k_params, layer_dims, hidden_act="ReLU",
                                       output_act="Linear", w_scale=1.0,
                                       last_w_scale=1e-3)
    padded_params = pad_actor_params(raw_params, action_dim)

    # B=8: single exact block.  B=200: 2-step batch grid (megacore) with a
    # ragged last block (OOB rows are discarded).
    for B in (8, 200):
        k_data, k_phi, k_eps = jax.random.split(k_data, 3)
        phi = jax.random.normal(k_phi, (B, obs_dim), jnp.float32)
        eps = jax.random.normal(k_eps, (B, action_dim), jnp.float32)  # rsample noise

        for deterministic in (False, True):
            act = actor_forward(padded_params, phi,
                                eps=None if deterministic else eps,
                                action_dim=action_dim, action_lim=action_lim,
                                log_std_bounds=log_std_bounds,
                                deterministic=deterministic)
            act = jax.block_until_ready(act)
            assert act.shape == (B, action_dim)

            ref = ref_actor_forward(raw_params, phi, eps, action_dim=action_dim,
                                    action_lim=action_lim,
                                    log_std_bounds=log_std_bounds,
                                    deterministic=deterministic,
                                    match_kernel_dtypes=True)
            assert jnp.allclose(act, ref, atol=1e-3, rtol=1e-3), (
                f"B={B} det={deterministic} "
                f"max err {float(jnp.max(jnp.abs(act - ref)))}")

            ref32 = ref_actor_forward(raw_params, phi, eps, action_dim=action_dim,
                                      action_lim=action_lim,
                                      log_std_bounds=log_std_bounds,
                                      deterministic=deterministic,
                                      match_kernel_dtypes=False)
            assert jnp.allclose(act, ref32, atol=2e-2), (
                f"B={B} det={deterministic} f32-parity max err "
                f"{float(jnp.max(jnp.abs(act - ref32)))}")

    print("KERNEL_OK")
</pallas_src>

<mosaic_0001>
module attributes {stable_mosaic.version = 11 : i64} {
  func.func @_actor_kernel(%arg0: i32, %arg1: memref<8x16xbf16, #tpu.memory_space<vmem>>, %arg2: memref<8x4xf32, #tpu.memory_space<vmem>>, %arg3: memref<16x128xbf16, #tpu.memory_space<vmem>>, %arg4: memref<1x128xf32, #tpu.memory_space<vmem>>, %arg5: memref<128x128xbf16, #tpu.memory_space<vmem>>, %arg6: memref<1x128xf32, #tpu.memory_space<vmem>>, %arg7: memref<128x256xf32, #tpu.memory_space<vmem>>, %arg8: memref<1x256xf32, #tpu.memory_space<vmem>>, %arg9: memref<8x128xf32, #tpu.memory_space<vmem>>) attributes {dimension_semantics = [#tpu.dimension_semantics<parallel>], iteration_bounds = array<i64: 1>, scalar_prefetch = 0 : i64, scratch_operands = 0 : i64, tpu.core_type = #tpu.core_type<tc>, window_params = [{transform_indices = @transform_0, window_bounds = array<i64: 8, 16>}, {transform_indices = @transform_1, window_bounds = array<i64: 8, 4>}, {pipeline_mode = #tpu.pipeline_mode<synchronous>, transform_indices = @transform_2, window_bounds = array<i64: 16, 128>}, {pipeline_mode = #tpu.pipeline_mode<synchronous>, transform_indices = @transform_3, window_bounds = array<i64: 1, 128>}, {pipeline_mode = #tpu.pipeline_mode<synchronous>, transform_indices = @transform_4, window_bounds = array<i64: 128, 128>}, {pipeline_mode = #tpu.pipeline_mode<synchronous>, transform_indices = @transform_5, window_bounds = array<i64: 1, 128>}, {pipeline_mode = #tpu.pipeline_mode<synchronous>, transform_indices = @transform_6, window_bounds = array<i64: 128, 256>}, {pipeline_mode = #tpu.pipeline_mode<synchronous>, transform_indices = @transform_7, window_bounds = array<i64: 1, 256>}, {transform_indices = @transform_8, window_bounds = array<i64: 8, 128>}]} {
    %c0 = arith.constant 0 : index
    %c0_0 = arith.constant 0 : index
    %0 = vector.load %arg1[%c0, %c0_0] : memref<8x16xbf16, #tpu.memory_space<vmem>>, vector<8x16xbf16>
    %c0_1 = arith.constant 0 : index
    %c0_2 = arith.constant 0 : index
    %1 = vector.load %arg3[%c0_1, %c0_2] : memref<16x128xbf16, #tpu.memory_space<vmem>>, vector<16x128xbf16>
    %c0_3 = arith.constant 0 : index
    %c0_4 = arith.constant 0 : index
    %2 = vector.load %arg4[%c0_3, %c0_4] : memref<1x128xf32, #tpu.memory_space<vmem>>, vector<1x128xf32>
    %cst = arith.constant dense<0.000000e+00> : vector<8x128xf32>
    %3 = tpu.matmul %0, %1, %cst {dimension_numbers = #tpu.dot_dimension_numbers<[1], [0], [0], [1], [0, 0, 1, 1], [], []>} : vector<8x16xbf16>, vector<16x128xbf16>, vector<8x128xf32> -> vector<8x128xf32>
    %4 = vector.broadcast %2 : vector<1x128xf32> to vector<8x128xf32>
    %5 = arith.addf %3, %4 : vector<8x128xf32>
    %cst_5 = arith.constant 0.000000e+00 : f32
    %6 = vector.broadcast %cst_5 : f32 to vector<8x128xf32>
    %7 = arith.maximumf %5, %6 : vector<8x128xf32>
    %8 = arith.truncf %7 : vector<8x128xf32> to vector<8x128xbf16>
    %c0_6 = arith.constant 0 : index
    %c0_7 = arith.constant 0 : index
    %9 = vector.load %arg5[%c0_6, %c0_7] : memref<128x128xbf16, #tpu.memory_space<vmem>>, vector<128x128xbf16>
    %c0_8 = arith.constant 0 : index
    %c0_9 = arith.constant 0 : index
    %10 = vector.load %arg6[%c0_8, %c0_9] : memref<1x128xf32, #tpu.memory_space<vmem>>, vector<1x128xf32>
    %cst_10 = arith.constant dense<0.000000e+00> : vector<8x128xf32>
    %11 = tpu.matmul %8, %9, %cst_10 {dimension_numbers = #tpu.dot_dimension_numbers<[1], [0], [0], [1], [0, 0, 1, 1], [], []>} : vector<8x128xbf16>, vector<128x128xbf16>, vector<8x128xf32> -> vector<8x128xf32>
    %12 = vector.broadcast %10 : vector<1x128xf32> to vector<8x128xf32>
    %13 = arith.addf %11, %12 : vector<8x128xf32>
    %cst_11 = arith.constant 0.000000e+00 : f32
    %14 = vector.broadcast %cst_11 : f32 to vector<8x128xf32>
    %15 = arith.maximumf %13, %14 : vector<8x128xf32>
    %c0_12 = arith.constant 0 : index
    %c0_13 = arith.constant 0 : index
    %16 = vector.load %arg7[%c0_12, %c0_13] : memref<128x256xf32, #tpu.memory_space<vmem>>, vector<128x256xf32>
    %c0_14 = arith.constant 0 : index
    %c0_15 = arith.constant 0 : index
    %17 = vector.load %arg8[%c0_14, %c0_15] : memref<1x256xf32, #tpu.memory_space<vmem>>, vector<1x256xf32>
    %cst_16 = arith.constant dense<0.000000e+00> : vector<8x256xf32>
    %18 = tpu.matmul %15, %16, %cst_16 {dimension_numbers = #tpu.dot_dimension_numbers<[1], [0], [0], [1], [0, 0, 1, 1], [], []>} : vector<8x128xf32>, vector<128x256xf32>, vector<8x256xf32> -> vector<8x256xf32>
    %19 = vector.broadcast %17 : vector<1x256xf32> to vector<8x256xf32>
    %20 = arith.addf %18, %19 : vector<8x256xf32>
    %21 = vector.extract_strided_slice %20 {offsets = [0, 0], sizes = [8, 128], strides = [1, 1]} : vector<8x256xf32> to vector<8x128xf32>
    %22 = math.tanh %21 : vector<8x128xf32>
    %cst_17 = arith.constant 1.000000e+00 : f32
    %23 = vector.broadcast %cst_17 : f32 to vector<8x128xf32>
    %24 = arith.mulf %23, %22 : vector<8x128xf32>
    %25 = vector.extract_strided_slice %20 {offsets = [0, 128], sizes = [8, 128], strides = [1, 1]} : vector<8x256xf32> to vector<8x128xf32>
    %cst_18 = arith.constant -2.000000e+01 : f32
    %cst_19 = arith.constant 2.000000e+00 : f32
    %26 = vector.broadcast %cst_18 : f32 to vector<8x128xf32>
    %27 = arith.maximumf %26, %25 : vector<8x128xf32>
    %28 = vector.broadcast %cst_19 : f32 to vector<8x128xf32>
    %29 = arith.minimumf %28, %27 : vector<8x128xf32>
    %30 = math.exp %29 : vector<8x128xf32>
    %31 = tpu.iota {dimensions = array<i32: 0>} : vector<4x128xi32>
    %32 = tpu.iota {dimensions = array<i32: 1>} : vector<4x128xi32>
    %33 = arith.cmpi eq, %31, %32 : vector<4x128xi32>
    %34 = arith.extui %33 : vector<4x128xi1> to vector<4x128xi32>
    %35 = arith.sitofp %34 : vector<4x128xi32> to vector<4x128xf32>
    %c0_20 = arith.constant 0 : index
    %c0_21 = arith.constant 0 : index
    %36 = vector.load %arg2[%c0_20, %c0_21] : memref<8x4xf32, #tpu.memory_space<vmem>>, vector<8x4xf32>
    %cst_22 = arith.constant dense<0.000000e+00> : vector<8x128xf32>
    %37 = tpu.matmul %36, %35, %cst_22 {dimension_numbers = #tpu.dot_dimension_numbers<[1], [0], [0], [1], [0, 0, 1, 1], [], []>} : vector<8x4xf32>, vector<4x128xf32>, vector<8x128xf32> -> vector<8x128xf32>
    %38 = arith.mulf %30, %37 : vector<8x128xf32>
    %39 = arith.addf %24, %38 : vector<8x128xf32>
    %c0_23 = arith.constant 0 : index
    %c0_24 = arith.constant 0 : index
    %40 = vector.load %arg9[%c0_23, %c0_24] : memref<8x128xf32, #tpu.memory_space<vmem>>, vector<8x128xf32>
    tpu.vector_store %arg9[%c0_23, %c0_24], %39 {strides = array<i32>} : memref<8x128xf32, #tpu.memory_space<vmem>>, vector<8x128xf32>,
    return
  }
  func.func @transform_0(%arg0: i32) -> (i32, i32) {
    %c0_i32 = arith.constant 0 : i32
    %c0_i32_0 = arith.constant 0 : i32
    return %arg0, %c0_i32 : i32, i32
  }
  func.func @transform_1(%arg0: i32) -> (i32, i32) {
    %c0_i32 = arith.constant 0 : i32
    %c0_i32_0 = arith.constant 0 : i32
    return %arg0, %c0_i32 : i32, i32
  }
  func.func @transform_2(%arg0: i32) -> (i32, i32) {
    %c0_i32 = arith.constant 0 : i32
    %c0_i32_0 = arith.constant 0 : i32
    %c0_i32_1 = arith.constant 0 : i32
    return %c0_i32, %c0_i32_0 : i32, i32
  }
  func.func @transform_3(%arg0: i32) -> (i32, i32) {
    %c0_i32 = arith.constant 0 : i32
    %c0_i32_0 = arith.constant 0 : i32
    %c0_i32_1 = arith.constant 0 : i32
    return %c0_i32, %c0_i32_0 : i32, i32
  }
  func.func @transform_4(%arg0: i32) -> (i32, i32) {
    %c0_i32 = arith.constant 0 : i32
    %c0_i32_0 = arith.constant 0 : i32
    %c0_i32_1 = arith.constant 0 : i32
    return %c0_i32, %c0_i32_0 : i32, i32
  }
  func.func @transform_5(%arg0: i32) -> (i32, i32) {
    %c0_i32 = arith.constant 0 : i32
    %c0_i32_0 = arith.constant 0 : i32
    %c0_i32_1 = arith.constant 0 : i32
    return %c0_i32, %c0_i32_0 : i32, i32
  }
  func.func @transform_6(%arg0: i32) -> (i32, i32) {
    %c0_i32 = arith.constant 0 : i32
    %c0_i32_0 = arith.constant 0 : i32
    %c0_i32_1 = arith.constant 0 : i32
    return %c0_i32, %c0_i32_0 : i32, i32
  }
  func.func @transform_7(%arg0: i32) -> (i32, i32) {
    %c0_i32 = arith.constant 0 : i32
    %c0_i32_0 = arith.constant 0 : i32
    %c0_i32_1 = arith.constant 0 : i32
    return %c0_i32, %c0_i32_0 : i32, i32
  }
  func.func @transform_8(%arg0: i32) -> (i32, i32) {
    %c0_i32 = arith.constant 0 : i32
    %c0_i32_0 = arith.constant 0 : i32
    return %arg0, %c0_i32 : i32, i32
  }
}

</mosaic_0001>

<llo_original>
// kernel: tpu_custom_call.1
$region0: #{tpu_custom_call.1}
  #allocation0 [shape = 'u32[]', space=smem, size = 0x4, offset = 0x4, fixed_abs, tag = 'smem constant byte address 0x4 - core index']
  #allocation1 [shape = 'u32[144,128]{1,0:T(1,128)}', space=vmem, size = 0x12000, scoped, tag = 'internal scratch']
  %s0 = inlined_call_operand.vmem [shape: bf16[8,16], index: 0, kind: input, shape index: {}]
  %s1 = inlined_call_operand.vmem [shape: f32[8,4], index: 1, kind: input, shape index: {}]
  %s2 = inlined_call_operand.vmem [shape: bf16[16,128], index: 2, kind: input, shape index: {}]
  %s3 = inlined_call_operand.vmem [shape: f32[1,128], index: 3, kind: input, shape index: {}]
  %s4 = inlined_call_operand.hbm [shape: bf16[128,128], index: 4, kind: input, shape index: {}]
  %s5 = inlined_call_operand.vmem [shape: f32[1,128], index: 5, kind: input, shape index: {}]
  %s6 = inlined_call_operand.hbm [shape: f32[128,256], index: 6, kind: input, shape index: {}]
  %s7 = inlined_call_operand.vmem [shape: f32[1,256], index: 7, kind: input, shape index: {}]
  %s8 = inlined_call_operand.hbm [shape: f32[8,128], index: 8, kind: output, shape index: {}]
  %s9 = sld [smem:[#allocation0]]
  $region50: #{tpu_custom_call.1} parent=0
    _
  %s11 = ssub.s32 1, %s9
  %s12 = scalar_select 0, %s11, %s9
  $region1: #{tpu_custom_call.1} parent=0
    #allocation2 [shape = 'u8[32768]{0}', space=vmem, size = 0x8000, scoped, tag = 'input window, operand 4, single buffered']
    #allocation3 [shape = 's32[1]{0}', space=sflag, size = 0x4, scoped, tag = 'scoped memory for tpu_custom_call.1']
    #allocation4 [shape = 's32[1]{0}', space=sflag, size = 0x4, scoped, tag = 'scoped memory for tpu_custom_call.1']
    #allocation5 [shape = 'u8[131072]{0}', space=vmem, size = 0x20000, scoped, tag = 'input window, operand 6, single buffered']
    #allocation6 [shape = 's32[1]{0}', space=sflag, size = 0x4, scoped, tag = 'scoped memory for tpu_custom_call.1']
    #allocation7 [shape = 'u8[4096]{0}', space=vmem, size = 0x1000, scoped, tag = 'output window, operand 0, single buffered']
    %13 = vsyncpa [#allocation3], 0
    %14 = vsyncpa [#allocation6], 0
    %15 = vsyncpa [#allocation4], 0
    // Predicated region
    $region2: #{tpu_custom_call.1} parent=1 // pred_check
      _
    $region3: #{tpu_custom_call.1} parent=1 // pred_check_branch
      %17 = sbr.rel (0) target = $region5
    $region4: #{tpu_custom_call.1} parent=1 // pred_region
      _
    $region5: #{tpu_custom_call.1} parent=1 // pred_fallthru
      _
    // Predicated region
    $region6: #{tpu_custom_call.1} parent=1 // pred_check
      _
    $region7: #{tpu_custom_call.1} parent=1 // pred_check_branch
      %19 = sbr.rel (0) target = $region9
    $region8: #{tpu_custom_call.1} parent=1 // pred_region
      _
    $region9: #{tpu_custom_call.1} parent=1 // pred_fallthru
      _
    // Predicated region
    $region10: #{tpu_custom_call.1} parent=1 // pred_check
      _
    $region11: #{tpu_custom_call.1} parent=1 // pred_check_branch
      %21 = sbr.rel (0) target = $region13
    $region12: #{tpu_custom_call.1} parent=1 // pred_region
      _
    $region13: #{tpu_custom_call.1} parent=1 // pred_fallthru
      _
    // Predicated region
    $region14: #{tpu_custom_call.1} parent=1 // pred_check
      _
    $region15: #{tpu_custom_call.1} parent=1 // pred_check_branch
      %23 = sbr.rel (0) target = $region17
    $region16: #{tpu_custom_call.1} parent=1 // pred_region
      _
    $region17: #{tpu_custom_call.1} parent=1 // pred_fallthru
      _
    // Predicated region
    $region18: #{tpu_custom_call.1} parent=1 // pred_check
      _
    $region19: #{tpu_custom_call.1} parent=1 // pred_check_branch
      %25 = sbr.rel (0) target = $region21
    $region20: #{tpu_custom_call.1} parent=1 // pred_region
      %s27 = ssub.s32 1024, 1024
      %28 = vsyncadd [#allocation3], %s27
      %s29 = sshll.u32 [#allocation2], 4
      %s30 = int_to_ptr.vmem [resolvable:$true] %s29
      %35 = dma.hbm_to_vmem [thread:$0]  %s4, 1024, %s30, [#allocation3], 64, 64, 4
    $region21: #{tpu_custom_call.1} parent=1 // pred_fallthru
      _
    // Predicated region
    $region22: #{tpu_custom_call.1} parent=1 // pred_check
      _
    $region23: #{tpu_custom_call.1} parent=1 // pred_check_branch
      %37 = sbr.rel (0) target = $region25
    $region24: #{tpu_custom_call.1} parent=1 // pred_region
      _
    $region25: #{tpu_custom_call.1} parent=1 // pred_fallthru
      _
    // Predicated region
    $region26: #{tpu_custom_call.1} parent=1 // pred_check
      _
    $region27: #{tpu_custom_call.1} parent=1 // pred_check_branch
      %39 = sbr.rel (0) target = $region29
    $region28: #{tpu_custom_call.1} parent=1 // pred_region
      %s41 = ssub.s32 4096, 4096
      %42 = vsyncadd [#allocation6], %s41
      %s43 = sshll.u32 [#allocation5], 4
      %s44 = int_to_ptr.vmem [resolvable:$true] %s43
      %49 = dma.hbm_to_vmem [thread:$0]  %s6, 4096, %s44, [#allocation6], 256, 256, 16
    $region29: #{tpu_custom_call.1} parent=1 // pred_fallthru
      _
    // Predicated region
    $region30: #{tpu_custom_call.1} parent=1 // pred_check
      _
    $region31: #{tpu_custom_call.1} parent=1 // pred_check_branch
      %51 = sbr.rel (0) target = $region33
    $region32: #{tpu_custom_call.1} parent=1 // pred_region
      _
    $region33: #{tpu_custom_call.1} parent=1 // pred_fallthru
      _
    // Predicated region
    $region34: #{tpu_custom_call.1} parent=1 // pred_check
      _
    $region35: #{tpu_custom_call.1} parent=1 // pred_check_branch
      %53 = sbr.rel (0) target = $region37
    $region36: #{tpu_custom_call.1} parent=1 // pred_region
      %54 = dma.done [#allocation3], 1024
    $region37: #{tpu_custom_call.1} parent=1 // pred_fallthru
      _
    // Predicated region
    $region38: #{tpu_custom_call.1} parent=1 // pred_check
      _
    $region39: #{tpu_custom_call.1} parent=1 // pred_check_branch
      %56 = sbr.rel (0) target = $region41
    $region40: #{tpu_custom_call.1} parent=1 // pred_region
      %57 = dma.done [#allocation6], 4096
    $region41: #{tpu_custom_call.1} parent=1 // pred_fallthru
      _
    %v59 = vld [vmem:[%s0] sm:$0xf]
    %v60 = vld [vmem:[%s2] sm:$0xf]
    %v61 = vld [vmem:[%s2 + $0x4] sm:$0xf]
    %v62 = vld [vmem:[%s3] sm:$0x1]
    %v64 = vlaneseq
    %v65 = vshrl.u32 %v64, 7
    %v66 = vsub.s32 0, %v65
    %v67 = vrot.slane %v62, %v66
    %v71 = vunpack.c.l.b16 %v60
    %v72 = vunpack.c.l.b16 %v61
    %v73 = vpack.c.b16 %v72, %v71
    %vm75 = vcmask 130048
    %v77 = vsel %vm75, %v59, 0
    %79 = vmatprep.subr.bf16.mxu0 0
    %80 = vmatpush1.bf16.msra.mxu0 %v73
    %81 = vmatprep.subr.bf16.mxu0 0
    %82 = vmatpush1.bf16.msra.mxu0 0
    %83 = vmatprep.subr.bf16.mxu0 0
    %84 = vmatpush1.bf16.msra.mxu0 0
    %85 = vmatprep.subr.bf16.mxu0 0
    %86 = vmatpush1.bf16.msra.mxu0 0
    %87 = vmatprep.subr.bf16.mxu0 0
    %88 = vmatpush1.bf16.msra.mxu0 0
    %89 = vmatprep.subr.bf16.mxu0 0
    %90 = vmatpush1.bf16.msra.mxu0 0
    %91 = vmatprep.subr.bf16.mxu0 0
    %92 = vmatpush1.bf16.msra.mxu0 0
    %93 = vmatprep.subr.bf16.mxu0 0
    %94 = vmatpush1.bf16.msra.mxu0 0
    %95 = vmatprep.subr.bf16.mxu0 0
    %96 = vmatpush1.bf16.msra.mxu0 0
    %97 = vmatprep.subr.bf16.mxu0 0
    %98 = vmatpush1.bf16.msra.mxu0 0
    %99 = vmatprep.subr.bf16.mxu0 0
    %100 = vmatpush1.bf16.msra.mxu0 0
    %101 = vmatprep.subr.bf16.mxu0 0
    %102 = vmatpush1.bf16.msra.mxu0 0
    %103 = vmatprep.subr.bf16.mxu0 0
    %104 = vmatpush1.bf16.msra.mxu0 0
    %105 = vmatprep.subr.bf16.mxu0 0
    %106 = vmatpush1.bf16.msra.mxu0 0
    %107 = vmatprep.subr.bf16.mxu0 0
    %108 = vmatpush1.bf16.msra.mxu0 0
    %109 = vmatprep.subr.bf16.mxu0 0
    %110 = vmatpush1.bf16.msra.mxu0 0
    %111 = vmatprep.mubr.bf16.mxu0 0
    %112 = vmatmul.mubr.bf16.gmra.mrb[0].mxu0 %v77
    %v113 = vpop.f32.mrb[0].mxu0
    %v114 = vadd.f32 %v67, %v113
    %v115 = vpop.f32.mrb[0].mxu0
    %v116 = vpop.f32.mrb[0].mxu0
    %v117 = vpop.f32.mrb[0].mxu0
    %118 = vdwg.mxu0
    %v119 = vmax.f32 %v114, 0.0
    %v120 = vpack.c.bf16 %v119, %v119
    %v121 = vld [vmem:[#allocation2] sm:$0xf]
    %v122 = vld [vmem:[#allocation2 + $0x4] sm:$0xf]
    %v123 = vld [vmem:[#allocation2 + $0x8] sm:$0xf]
    %v124 = vld [vmem:[#allocation2 + $0xc] sm:$0xf]
    %v125 = vld [vmem:[#allocation2 + $0x10] sm:$0xf]
    %v126 = vld [vmem:[#allocation2 + $0x14] sm:$0xf]
    %v127 = vld [vmem:[#allocation2 + $0x18] sm:$0xf]
    %v128 = vld [vmem:[#allocation2 + $0x1c] sm:$0xf]
    %v129 = vld [vmem:[#allocation2 + $0x20] sm:$0xf]
    %v130 = vld [vmem:[#allocation2 + $0x24] sm:$0xf]
    %v131 = vld [vmem:[#allocation2 + $0x28] sm:$0xf]
    %v132 = vld [vmem:[#allocation2 + $0x2c] sm:$0xf]
    %v133 = vld [vmem:[#allocation2 + $0x30] sm:$0xf]
    %v134 = vld [vmem:[#allocation2 + $0x34] sm:$0xf]
    %v135 = vld [vmem:[#allocation2 + $0x38] sm:$0xf]
    %v136 = vld [vmem:[#allocation2 + $0x3c] sm:$0xf]
    %v137 = vld [vmem:[%s5] sm:$0x1]
    %v139 = vlaneseq
    %v140 = vshrl.u32 %v139, 7
    %v141 = vsub.s32 0, %v140
    %v142 = vrot.slane %v137, %v141
    %v160 = vunpack.c.l.b16 %v121
    %v161 = vunpack.c.l.b16 %v122
    %v162 = vunpack.c.l.b16 %v123
    %v163 = vunpack.c.l.b16 %v124
    %v164 = vunpack.c.l.b16 %v125
    %v165 = vunpack.c.l.b16 %v126
    %v166 = vunpack.c.l.b16 %v127
    %v167 = vunpack.c.l.b16 %v128
    %v168 = vunpack.c.l.b16 %v129
    %v169 = vunpack.c.l.b16 %v130
    %v170 = vunpack.c.l.b16 %v131
    %v171 = vunpack.c.l.b16 %v132
    %v172 = vunpack.c.l.b16 %v133
    %v173 = vunpack.c.l.b16 %v134
    %v174 = vunpack.c.l.b16 %v135
    %v175 = vunpack.c.l.b16 %v136
    %v176 = vpack.c.b16 %v161, %v160
    %v177 = vpack.c.b16 %v163, %v162
    %v178 = vpack.c.b16 %v165, %v164
    %v179 = vpack.c.b16 %v167, %v166
    %v180 = vpack.c.b16 %v169, %v168
    %v181 = vpack.c.b16 %v171, %v170
    %v182 = vpack.c.b16 %v173, %v172
    %v183 = vpack.c.b16 %v175, %v174
    %192 = vmatprep.subr.bf16.mxu0 0
    %193 = vmatpush1.bf16.msra.mxu0 %v176
    %194 = vmatprep.subr.bf16.mxu0 0
    %195 = vmatpush1.bf16.msra.mxu0 %v177
    %196 = vmatprep.subr.bf16.mxu0 0
    %197 = vmatpush1.bf16.msra.mxu0 %v178
    %198 = vmatprep.subr.bf16.mxu0 0
    %199 = vmatpush1.bf16.msra.mxu0 %v179
    %200 = vmatprep.subr.bf16.mxu0 0
    %201 = vmatpush1.bf16.msra.mxu0 %v180
    %202 = vmatprep.subr.bf16.mxu0 0
    %203 = vmatpush1.bf16.msra.mxu0 %v181
    %204 = vmatprep.subr.bf16.mxu0 0
    %205 = vmatpush1.bf16.msra.mxu0 %v182
    %206 = vmatprep.subr.bf16.mxu0 0
    %207 = vmatpush1.bf16.msra.mxu0 %v183
    %208 = vmatprep.subr.bf16.mxu0 0
    %209 = vmatpush1.bf16.msra.mxu0 0
    %210 = vmatprep.subr.bf16.mxu0 0
    %211 = vmatpush1.bf16.msra.mxu0 0
    %212 = vmatprep.subr.bf16.mxu0 0
    %213 = vmatpush1.bf16.msra.mxu0 0
    %214 = vmatprep.subr.bf16.mxu0 0
    %215 = vmatpush1.bf16.msra.mxu0 0
    %216 = vmatprep.subr.bf16.mxu0 0
    %217 = vmatpush1.bf16.msra.mxu0 0
    %218 = vmatprep.subr.bf16.mxu0 0
    %219 = vmatpush1.bf16.msra.mxu0 0
    %220 = vmatprep.subr.bf16.mxu0 0
    %221 = vmatpush1.bf16.msra.mxu0 0
    %222 = vmatprep.subr.bf16.mxu0 0
    %223 = vmatpush1.bf16.msra.mxu0 0
    %224 = vmatprep.mubr.bf16.mxu0 0
    %225 = vmatmul.mubr.bf16.gmra.mrb[0].mxu0 %v120
    %v226 = vpop.f32.mrb[0].mxu0
    %v227 = vadd.f32 %v142, %v226
    %v228 = vpop.f32.mrb[0].mxu0
    %v229 = vpop.f32.mrb[0].mxu0
    %v230 = vpop.f32.mrb[0].mxu0
    %231 = vdwg.mxu0
    %v232 = vmax.f32 %v227, 0.0
    %v233 = vld [vmem:[#allocation5] sm:$0xff]
    %v234 = vld [vmem:[#allocation5 + $0x8] sm:$0xff]
    %v235 = vld [vmem:[#allocation5 + $0x10] sm:$0xff]
    %v236 = vld [vmem:[#allocation5 + $0x18] sm:$0xff]
    %v237 = vld [vmem:[#allocation5 + $0x20] sm:$0xff]
    %v238 = vld [vmem:[#allocation5 + $0x28] sm:$0xff]
    %v239 = vld [vmem:[#allocation5 + $0x30] sm:$0xff]
    %v240 = vld [vmem:[#allocation5 + $0x38] sm:$0xff]
    %v241 = vld [vmem:[#allocation5 + $0x40] sm:$0xff]
    %v242 = vld [vmem:[#allocation5 + $0x48] sm:$0xff]
    %v243 = vld [vmem:[#allocation5 + $0x50] sm:$0xff]
    %v244 = vld [vmem:[#allocation5 + $0x58] sm:$0xff]
    %v245 = vld [vmem:[#allocation5 + $0x60] sm:$0xff]
    %v246 = vld [vmem:[#allocation5 + $0x68] sm:$0xff]
    %v247 = vld [vmem:[#allocation5 + $0x70] sm:$0xff]
    %v248 = vld [vmem:[#allocation5 + $0x78] sm:$0xff]
    %v249 = vld [vmem:[#allocation5 + $0x80] sm:$0xff]
    %v250 = vld [vmem:[#allocation5 + $0x88] sm:$0xff]
    %v251 = vld [vmem:[#allocation5 + $0x90] sm:$0xff]
    %v252 = vld [vmem:[#allocation5 + $0x98] sm:$0xff]
    %v253 = vld [vmem:[#allocation5 + $0xa0] sm:$0xff]
    %v254 = vld [vmem:[#allocation5 + $0xa8] sm:$0xff]
    %v255 = vld [vmem:[#allocation5 + $0xb0] sm:$0xff]
    %v256 = vld [vmem:[#allocation5 + $0xb8] sm:$0xff]
    %v257 = vld [vmem:[#allocation5 + $0xc0] sm:$0xff]
    %v258 = vld [vmem:[#allocation5 + $0xc8] sm:$0xff]
    %v259 = vld [vmem:[#allocation5 + $0xd0] sm:$0xff]
    %v260 = vld [vmem:[#allocation5 + $0xd8] sm:$0xff]
    %v261 = vld [vmem:[#allocation5 + $0xe0] sm:$0xff]
    %v262 = vld [vmem:[#allocation5 + $0xe8] sm:$0xff]
    %v263 = vld [vmem:[#allocation5 + $0xf0] sm:$0xff]
    %v264 = vld [vmem:[#allocation5 + $0xf8] sm:$0xff]
    %v265 = vld [vmem:[%s7] sm:$0x3]
    %v267 = vlaneseq
    %v268 = vshrl.u32 %v267, 7
    %v269 = vsub.s32 0, %v268
    %v270 = vrot.slane %v265, %v269
    %v271 = vlaneseq
    %v272 = vshrl.u32 %v271, 7
    %v273 = vsub.s32 1, %v272
    %v274 = vrot.slane %v265, %v273
    %277 = vmatprep.subr.mxu0 %v234
    %278 = vmatpush1.msra.mxu0 %v233
    %279 = vmatprep.subr.mxu0 %v236
    %280 = vmatpush1.msra.mxu0 %v235
    %281 = vmatprep.subr.mxu0 %v238
    %282 = vmatpush1.msra.mxu0 %v237
    %283 = vmatprep.subr.mxu0 %v240
    %284 = vmatpush1.msra.mxu0 %v239
    %285 = vmatprep.subr.mxu0 %v242
    %286 = vmatpush1.msra.mxu0 %v241
    %287 = vmatprep.subr.mxu0 %v244
    %288 = vmatpush1.msra.mxu0 %v243
    %289 = vmatprep.subr.mxu0 %v246
    %290 = vmatpush1.msra.mxu0 %v245
    %291 = vmatprep.subr.mxu0 %v248
    %292 = vmatpush1.msra.mxu0 %v247
    %293 = vmatprep.subr.mxu0 %v250
    %294 = vmatpush1.msra.mxu0 %v249
    %295 = vmatprep.subr.mxu0 %v252
    %296 = vmatpush1.msra.mxu0 %v251
    %297 = vmatprep.subr.mxu0 %v254
    %298 = vmatpush1.msra.mxu0 %v253
    %299 = vmatprep.subr.mxu0 %v256
    %300 = vmatpush1.msra.mxu0 %v255
    %301 = vmatprep.subr.mxu0 %v258
    %302 = vmatpush1.msra.mxu0 %v257
    %303 = vmatprep.subr.mxu0 %v260
    %304 = vmatpush1.msra.mxu0 %v259
    %305 = vmatprep.subr.mxu0 %v262
    %306 = vmatpush1.msra.mxu0 %v261
    %307 = vmatprep.subr.mxu0 %v264
    %308 = vmatpush1.msra.mxu0 %v263
    %309 = vmatprep.subr.mxu0 0.0
    %310 = vmatpush1.msra.mxu0 0.0
    %311 = vmatprep.subr.mxu0 0.0
    %312 = vmatpush1.msra.mxu0 0.0
    %313 = vmatprep.subr.mxu0 0.0
    %314 = vmatpush1.msra.mxu0 0.0
    %315 = vmatprep.subr.mxu0 0.0
    %316 = vmatpush1.msra.mxu0 0.0
    %317 = vmatprep.subr.mxu0 0.0
    %318 = vmatpush1.msra.mxu0 0.0
    %319 = vmatprep.subr.mxu0 0.0
    %320 = vmatpush1.msra.mxu0 0.0
    %321 = vmatprep.subr.mxu0 0.0
    %322 = vmatpush1.msra.mxu0 0.0
    %323 = vmatprep.subr.mxu0 0.0
    %324 = vmatpush1.msra.mxu0 0.0
    %325 = vmatprep.subr.mxu0 0.0
    %326 = vmatpush1.msra.mxu0 0.0
    %327 = vmatprep.subr.mxu0 0.0
    %328 = vmatpush1.msra.mxu0 0.0
    %329 = vmatprep.subr.mxu0 0.0
    %330 = vmatpush1.msra.mxu0 0.0
    %331 = vmatprep.subr.mxu0 0.0
    %332 = vmatpush1.msra.mxu0 0.0
    %333 = vmatprep.subr.mxu0 0.0
    %334 = vmatpush1.msra.mxu0 0.0
    %335 = vmatprep.subr.mxu0 0.0
    %336 = vmatpush1.msra.mxu0 0.0
    %337 = vmatprep.subr.mxu0 0.0
    %338 = vmatpush1.msra.mxu0 0.0
    %339 = vmatprep.subr.mxu0 0.0
    %340 = vmatpush1.msra.mxu0 0.0
    %341 = vmatprep.mubr.f32.mxu0 0.0
    %342 = vmatmul.mubr.f32.gmra.mrb[0].mxu0 %v232
    %v343 = vpop.f32.mrb[0].mxu0
    %v344 = vadd.f32 %v270, %v343
    %v345 = vpop.f32.mrb[0].mxu0
    %v346 = vadd.f32 %v274, %v345
    %347 = vdwg.mxu0
    %v348 = vtanh.pop %v344
    %v349 = vmax.f32 %v346, -20.0
    %v350 = vmin.f32 %v349, 2.0
    %v351 = vmul.f32 %v350, 1.442695
    %v352 = vpow.pop %v351
    %v353 = vlaneseq
    %v354 = vshrl.u32 %v353, 7
    %v355 = vlaneseq
    %v356 = vand.u32 %v355, 127
    %vm357 = vcmp.eq.s32.totalorder %v354, %v356
    %v358 = vsel %vm357, 1, 0
    %v359 = vcvt.s32.f32 %v358
    %v360 = vld [vmem:[%s1] sm:$0xff]
    %vm361 = vcmask 31744
    %v363 = vsel %vm361, %v360, 0
    %vm365 = vcmask 1043456
    %v367 = vsel %vm365, %v359, 0
    %369 = vmatprep.subr.mxu0 0.0
    %370 = vmatpush1.msra.mxu0 %v367
    %371 = vmatprep.subr.mxu0 0.0
    %372 = vmatpush1.msra.mxu0 0.0
    %373 = vmatprep.subr.mxu0 0.0
    %374 = vmatpush1.msra.mxu0 0.0
    %375 = vmatprep.subr.mxu0 0.0
    %376 = vmatpush1.msra.mxu0 0.0
    %377 = vmatprep.subr.mxu0 0.0
    %378 = vmatpush1.msra.mxu0 0.0
    %379 = vmatprep.subr.mxu0 0.0
    %380 = vmatpush1.msra.mxu0 0.0
    %381 = vmatprep.subr.mxu0 0.0
    %382 = vmatpush1.msra.mxu0 0.0
    %383 = vmatprep.subr.mxu0 0.0
    %384 = vmatpush1.msra.mxu0 0.0
    %385 = vmatprep.subr.mxu0 0.0
    %386 = vmatpush1.msra.mxu0 0.0
    %387 = vmatprep.subr.mxu0 0.0
    %388 = vmatpush1.msra.mxu0 0.0
    %389 = vmatprep.subr.mxu0 0.0
    %390 = vmatpush1.msra.mxu0 0.0
    %391 = vmatprep.subr.mxu0 0.0
    %392 = vmatpush1.msra.mxu0 0.0
    %393 = vmatprep.subr.mxu0 0.0
    %394 = vmatpush1.msra.mxu0 0.0
    %395 = vmatprep.subr.mxu0 0.0
    %396 = vmatpush1.msra.mxu0 0.0
    %397 = vmatprep.subr.mxu0 0.0
    %398 = vmatpush1.msra.mxu0 0.0
    %399 = vmatprep.subr.mxu0 0.0
    %400 = vmatpush1.msra.mxu0 0.0
    %401 = vmatprep.subr.mxu0 0.0
    %402 = vmatpush1.msra.mxu0 0.0
    %403 = vmatprep.subr.mxu0 0.0
    %404 = vmatpush1.msra.mxu0 0.0
    %405 = vmatprep.subr.mxu0 0.0
    %406 = vmatpush1.msra.mxu0 0.0
    %407 = vmatprep.subr.mxu0 0.0
    %408 = vmatpush1.msra.mxu0 0.0
    %409 = vmatprep.subr.mxu0 0.0
    %410 = vmatpush1.msra.mxu0 0.0
    %411 = vmatprep.subr.mxu0 0.0
    %412 = vmatpush1.msra.mxu0 0.0
    %413 = vmatprep.subr.mxu0 0.0
    %414 = vmatpush1.msra.mxu0 0.0
    %415 = vmatprep.subr.mxu0 0.0
    %416 = vmatpush1.msra.mxu0 0.0
    %417 = vmatprep.subr.mxu0 0.0
    %418 = vmatpush1.msra.mxu0 0.0
    %419 = vmatprep.subr.mxu0 0.0
    %420 = vmatpush1.msra.mxu0 0.0
    %421 = vmatprep.subr.mxu0 0.0
    %422 = vmatpush1.msra.mxu0 0.0
    %423 = vmatprep.subr.mxu0 0.0
    %424 = vmatpush1.msra.mxu0 0.0
    %425 = vmatprep.subr.mxu0 0.0
    %426 = vmatpush1.msra.mxu0 0.0
    %427 = vmatprep.subr.mxu0 0.0
    %428 = vmatpush1.msra.mxu0 0.0
    %429 = vmatprep.subr.mxu0 0.0
    %430 = vmatpush1.msra.mxu0 0.0
    %431 = vmatprep.subr.mxu0 0.0
    %432 = vmatpush1.msra.mxu0 0.0
    %433 = vmatprep.mubr.f32.mxu0 0.0
    %434 = vmatmul.mubr.f32.gmra.mrb[0].mxu0 %v363
    %v435 = vpop.f32.mrb[0].mxu0
    %v436 = vadd.f32 0.0, %v435
    %v437 = vpop.f32.mrb[0].mxu0
    %438 = vdwg.mxu0
    %v439 = vmul.f32 %v352, %v436
    %v440 = vadd.f32 %v348, %v439
    %441 = vst [vmem:[#allocation7] sm:$0xff] %v440
    // Predicated region
    $region42: #{tpu_custom_call.1} parent=1 // pred_check
      _
    $region43: #{tpu_custom_call.1} parent=1 // pred_check_branch
      %443 = sbr.rel (0) target = $region45
    $region44: #{tpu_custom_call.1} parent=1 // pred_region
      %s445 = ssub.s32 128, 128
      %446 = vsyncadd [#allocation4], %s445
      %s448 = sshll.u32 [#allocation7], 4
      %s449 = int_to_ptr.vmem [resolvable:$true] %s448
      %451 = dma.vmem_to_hbm [thread:$0]  %s449, 128, %s8, [#allocation4]
    $region45: #{tpu_custom_call.1} parent=1 // pred_fallthru
      _
    // Predicated region
    $region46: #{tpu_custom_call.1} parent=1 // pred_check
      _
    $region47: #{tpu_custom_call.1} parent=1 // pred_check_branch
      %453 = sbr.rel (0) target = $region49
    $region48: #{tpu_custom_call.1} parent=1 // pred_region
      %454 = dma.done [#allocation4], 128
    $region49: #{tpu_custom_call.1} parent=1 // pred_fallthru
      _
    %455 = vsyncpa [#allocation3], 1
    %456 = vsyncpa [#allocation6], 1
    %457 = vsyncpa [#allocation4], 1

</llo_original>
